<compile_context>
chip_gen: v6e
topology: v6e:2x2x1
jax: 0.10.0
libtpu: 0.0.40
codegen_flags: <defaults>
</compile_context>

<pallas_src>
import jax
import jax.numpy as jnp
from jax import lax
from jax.experimental import pallas as pl
from jax.experimental.pallas import tpu as pltpu


def _round_up(v, m):
    return (v + m - 1) // m * m


def msm_kernel(x_ref, wa_ref, ba_ref, wb_ref, bb_ref, out_ref):
    # Cast the streamed x tile to the compute dtype in-kernel (no extra HBM pass).
    x = x_ref[...].astype(wa_ref.dtype)

    # Fused first layer for both heads: (tile_n, F) @ (F, 2H_pad) -> (tile_n, 2H_pad)
    h = jnp.dot(x, wa_ref[...], preferred_element_type=jnp.float32)
    h = jnp.maximum(h + ba_ref[...], 0.0)

    # Fused second layer in NT form so the MXU result is already lane-dense:
    # (2, 2H_pad) . (tile_n, 2H_pad) contracting the hidden axis -> (2, tile_n).
    # Row 0 = head_y0, row 1 = head_y1 (block-diagonal packing -> exact).
    y_t = lax.dot_general(
        wb_ref[...], h,
        dimension_numbers=(((1,), (1,)), ((), ())),
        preferred_element_type=jnp.float32)
    out_ref[...] = (y_t + bb_ref[...]).astype(out_ref.dtype)


def msm_forward(x, t, params, *, compute_dtype=jnp.float32, target_tile_bytes=2 << 20):
    """x: (B, T, F), t: (B, T) int/bool. Returns dict of (B, T) f32 arrays."""
    B, T, F = x.shape
    N = B * T
    (w0a, b0a, w0b, b0b, w1a, b1a, w1b, b1b) = params
    H = w0a.shape[1]
    H2 = 2 * H
    H2p = _round_up(H2, 128)          # lane-dense fused hidden width

    # ---- pack both heads into fused, lane-dense weights (tiny; VMEM-resident) ----
    w_a = (jnp.zeros((F, H2p), jnp.float32)
           .at[:, :H].set(w0a).at[:, H:H2].set(w1a)).astype(compute_dtype)   # (F, 2H_pad)
    b_a = (jnp.zeros((1, H2p), jnp.float32)
           .at[:, :H].set(b0a).at[:, H:H2].set(b1a))                         # (1, 2H_pad)
    w_b = (jnp.zeros((2, H2p), jnp.float32)
           .at[0, :H].set(w0b[:, 0]).at[1, H:H2].set(w1b[:, 0]))             # (2, 2H_pad)
    b_b = jnp.concatenate([b0b, b1b], axis=0)                                # (2, 1)

    # ---- x streams in its incoming dtype; no pad, no wrapper cast ----
    x_flat = x.reshape(N, F)
    x_itemsize = jnp.dtype(x_flat.dtype).itemsize

    # ---- byte-budgeted row tile; lane-dense output needs tile_n % 128 == 0 or == N ----
    F_pad = _round_up(F, 128)         # lane-padded x width in VMEM
    if N <= 256:
        tile_n = N                    # single full-dim tile (tiny problem)
    else:
        rows = max(128, (target_tile_bytes // (F_pad * x_itemsize)) // 128 * 128)
        if N <= 2 * rows:
            tile_n = max(128, _round_up((N + 1) // 2, 128))   # >=2 steps for v7x megacore
        else:
            tile_n = rows
    num_tiles = pl.cdiv(N, tile_n)    # partial trailing block handled by Pallas

    # ---- VMEM working-set budget -> explicit scoped-VMEM limit (v7x-safe) ----
    w_bytes = (F_pad * H2p * jnp.dtype(compute_dtype).itemsize
               + H2p * 4 + 2 * H2p * 4 + 2 * 4)
    vmem_est = (2 * tile_n * F_pad * x_itemsize            # double-buffered x tiles
                + tile_n * H2p * 4                         # h intermediate (f32)
                + 2 * 2 * _round_up(tile_n, 128) * 4       # double-buffered out tiles
                + 2 * w_bytes)                             # resident fused weights
    vmem_limit = int(min(48 << 20, max(32 << 20, 2 * vmem_est)))

    cost = pl.CostEstimate(
        flops=2 * N * F * H2 + 2 * N * H2 * 2,
        transcendentals=0,
        bytes_accessed=int(N * F * x_itemsize + 2 * N * 4 + w_bytes))

    out = pl.pallas_call(
        msm_kernel,
        out_shape=jax.ShapeDtypeStruct((2, N), jnp.float32),
        grid=(num_tiles,),
        in_specs=[
            pl.BlockSpec((tile_n, F), lambda i: (i, 0)),    # streamed x row tile
            pl.BlockSpec((F, H2p), lambda i: (0, 0)),       # fused layer-1 weight (resident)
            pl.BlockSpec((1, H2p), lambda i: (0, 0)),       # fused layer-1 bias
            pl.BlockSpec((2, H2p), lambda i: (0, 0)),       # fused layer-2 weight (2 head rows)
            pl.BlockSpec((2, 1), lambda i: (0, 0)),         # fused layer-2 bias
        ],
        out_specs=pl.BlockSpec((2, tile_n), lambda i: (0, i)),   # lane-dense (2, N) output
        compiler_params=pltpu.CompilerParams(
            dimension_semantics=("parallel",),
            vmem_limit_bytes=vmem_limit),
        cost_estimate=cost,
    )(x_flat, w_a, b_a, w_b, b_b)

    y0 = out[0].reshape(B, T)
    y1 = out[1].reshape(B, T)
    is_treated = (t == 1)
    return {
        'factual_pred': jnp.where(is_treated, y1, y0),
        'counterfactual_pred': jnp.where(is_treated, y0, y1),
    }


def init_params(key, input_dim, hidden_dim):
    """Deterministic init matching the shapes of the two nn.Sequential heads."""
    ks = jax.random.split(key, 8)

    def lin(kw, kb, fan_in, fan_out):
        bound = 1.0 / jnp.sqrt(fan_in)
        w = jax.random.uniform(kw, (fan_in, fan_out), jnp.float32, -bound, bound)
        b = jax.random.uniform(kb, (1, fan_out), jnp.float32, -bound, bound)
        return w, b

    w0a, b0a = lin(ks[0], ks[1], input_dim, hidden_dim)
    w0b, b0b = lin(ks[2], ks[3], hidden_dim, 1)
    w1a, b1a = lin(ks[4], ks[5], input_dim, hidden_dim)
    w1b, b1b = lin(ks[6], ks[7], hidden_dim, 1)
    return (w0a, b0a, w0b, b0b, w1a, b1a, w1b, b1b)


def msm_reference(x, t, params, *, compute_dtype=jnp.float32):
    """Pure-JAX reference (with matching input/weight quantization) for validation."""
    (w0a, b0a, w0b, b0b, w1a, b1a, w1b, b1b) = params
    B, T, F = x.shape
    xq = x.reshape(B * T, F).astype(compute_dtype).astype(jnp.float32)
    w0aq = w0a.astype(compute_dtype).astype(jnp.float32)
    w1aq = w1a.astype(compute_dtype).astype(jnp.float32)
    y0 = (jnp.maximum(xq @ w0aq + b0a, 0.0) @ w0b + b0b).reshape(B, T)
    y1 = (jnp.maximum(xq @ w1aq + b1a, 0.0) @ w1b + b1b).reshape(B, T)
    is1 = (t == 1)
    return {
        'factual_pred': jnp.where(is1, y1, y0),
        'counterfactual_pred': jnp.where(is1, y0, y1),
    }


if __name__ == "__main__":
    key = jax.random.PRNGKey(0)
    k_x, k_t, k_p, k_x2, k_t2, k_p2 = jax.random.split(key, 6)

    # Small shapes consistent with the module: (B, T, F) + hidden.
    B, T, F, H = 2, 8, 32, 32
    x = jax.random.normal(k_x, (B, T, F), jnp.float32)
    t = jax.random.bernoulli(k_t, 0.5, (B, T)).astype(jnp.int32)
    params = init_params(k_p, F, H)

    # f32 path — tight check against pure-JAX reference (single-tile path).
    out = msm_forward(x, t, params)
    jax.block_until_ready(out)
    ref = msm_reference(x, t, params)
    for k in ('factual_pred', 'counterfactual_pred'):
        assert out[k].shape == (B, T)
        assert jnp.allclose(out[k], ref[k], atol=1e-4, rtol=1e-4), k

    # Multi-tile path: N=400 -> two 256-row tiles with a partial trailing block,
    # 2H=96 zero-padded to 128 lanes.
    B2, T2, F2, H2 = 5, 80, 48, 48
    x2 = jax.random.normal(k_x2, (B2, T2, F2), jnp.float32)
    t2 = jax.random.bernoulli(k_t2, 0.5, (B2, T2)).astype(jnp.int32)
    params2 = init_params(k_p2, F2, H2)
    out2 = msm_forward(x2, t2, params2)
    jax.block_until_ready(out2)
    ref2 = msm_reference(x2, t2, params2)
    for k in ('factual_pred', 'counterfactual_pred'):
        assert out2[k].shape == (B2, T2)
        assert jnp.allclose(out2[k], ref2[k], atol=1e-4, rtol=1e-4), k

    # bf16 compute path (bf16 weights, in-kernel x cast) — check vs quantized reference.
    out_bf16 = msm_forward(x, t, params, compute_dtype=jnp.bfloat16)
    jax.block_until_ready(out_bf16)
    ref_bf16 = msm_reference(x, t, params, compute_dtype=jnp.bfloat16)
    for k in ('factual_pred', 'counterfactual_pred'):
        assert jnp.allclose(out_bf16[k], ref_bf16[k], atol=1e-2, rtol=1e-2), k

    print("KERNEL_OK")
</pallas_src>

<mosaic_0001>
module attributes {stable_mosaic.version = 11 : i64} {
  func.func @msm_kernel(%arg0: i32, %arg1: memref<16x32xf32, #tpu.memory_space<vmem>>, %arg2: memref<32x128xf32, #tpu.memory_space<vmem>>, %arg3: memref<1x128xf32, #tpu.memory_space<vmem>>, %arg4: memref<2x128xf32, #tpu.memory_space<vmem>>, %arg5: memref<2x1xf32, #tpu.memory_space<vmem>>, %arg6: memref<2x16xf32, #tpu.memory_space<vmem>>) attributes {dimension_semantics = [#tpu.dimension_semantics<parallel>], iteration_bounds = array<i64: 1>, scalar_prefetch = 0 : i64, scratch_operands = 0 : i64, tpu.core_type = #tpu.core_type<tc>, window_params = [{transform_indices = @transform_0, window_bounds = array<i64: 16, 32>}, {pipeline_mode = #tpu.pipeline_mode<synchronous>, transform_indices = @transform_1, window_bounds = array<i64: 32, 128>}, {pipeline_mode = #tpu.pipeline_mode<synchronous>, transform_indices = @transform_2, window_bounds = array<i64: 1, 128>}, {pipeline_mode = #tpu.pipeline_mode<synchronous>, transform_indices = @transform_3, window_bounds = array<i64: 2, 128>}, {pipeline_mode = #tpu.pipeline_mode<synchronous>, transform_indices = @transform_4, window_bounds = array<i64: 2, 1>}, {transform_indices = @transform_5, window_bounds = array<i64: 2, 16>}]} {
    %c0 = arith.constant 0 : index
    %c0_0 = arith.constant 0 : index
    %0 = vector.load %arg1[%c0, %c0_0] : memref<16x32xf32, #tpu.memory_space<vmem>>, vector<16x32xf32>
    %c0_1 = arith.constant 0 : index
    %c0_2 = arith.constant 0 : index
    %1 = vector.load %arg2[%c0_1, %c0_2] : memref<32x128xf32, #tpu.memory_space<vmem>>, vector<32x128xf32>
    %cst = arith.constant dense<0.000000e+00> : vector<16x128xf32>
    %2 = tpu.matmul %0, %1, %cst {dimension_numbers = #tpu.dot_dimension_numbers<[1], [0], [0], [1], [0, 0, 1, 1], [], []>} : vector<16x32xf32>, vector<32x128xf32>, vector<16x128xf32> -> vector<16x128xf32>
    %c0_3 = arith.constant 0 : index
    %c0_4 = arith.constant 0 : index
    %3 = vector.load %arg3[%c0_3, %c0_4] : memref<1x128xf32, #tpu.memory_space<vmem>>, vector<1x128xf32>
    %4 = vector.broadcast %3 : vector<1x128xf32> to vector<16x128xf32>
    %5 = arith.addf %2, %4 : vector<16x128xf32>
    %cst_5 = arith.constant 0.000000e+00 : f32
    %6 = vector.broadcast %cst_5 : f32 to vector<16x128xf32>
    %7 = arith.maximumf %5, %6 : vector<16x128xf32>
    %c0_6 = arith.constant 0 : index
    %c0_7 = arith.constant 0 : index
    %8 = vector.load %arg4[%c0_6, %c0_7] : memref<2x128xf32, #tpu.memory_space<vmem>>, vector<2x128xf32>
    %cst_8 = arith.constant dense<0.000000e+00> : vector<2x16xf32>
    %9 = tpu.matmul %8, %7, %cst_8 {dimension_numbers = #tpu.dot_dimension_numbers<[1], [1], [0], [0], [0, 0, 1, 0], [], []>} : vector<2x128xf32>, vector<16x128xf32>, vector<2x16xf32> -> vector<2x16xf32>
    %c0_9 = arith.constant 0 : index
    %c0_10 = arith.constant 0 : index
    %10 = vector.load %arg5[%c0_9, %c0_10] : memref<2x1xf32, #tpu.memory_space<vmem>>, vector<2x1xf32>
    %11 = vector.broadcast %10 : vector<2x1xf32> to vector<2x16xf32>
    %12 = arith.addf %9, %11 : vector<2x16xf32>
    %c0_11 = arith.constant 0 : index
    %c0_12 = arith.constant 0 : index
    %13 = vector.load %arg6[%c0_11, %c0_12] : memref<2x16xf32, #tpu.memory_space<vmem>>, vector<2x16xf32>
    tpu.vector_store %arg6[%c0_11, %c0_12], %12 {strides = array<i32>} : memref<2x16xf32, #tpu.memory_space<vmem>>, vector<2x16xf32>,
    return
  }
  func.func @transform_0(%arg0: i32) -> (i32, i32) {
    %c0_i32 = arith.constant 0 : i32
    %c0_i32_0 = arith.constant 0 : i32
    return %arg0, %c0_i32 : i32, i32
  }
  func.func @transform_1(%arg0: i32) -> (i32, i32) {
    %c0_i32 = arith.constant 0 : i32
    %c0_i32_0 = arith.constant 0 : i32
    %c0_i32_1 = arith.constant 0 : i32
    return %c0_i32, %c0_i32_0 : i32, i32
  }
  func.func @transform_2(%arg0: i32) -> (i32, i32) {
    %c0_i32 = arith.constant 0 : i32
    %c0_i32_0 = arith.constant 0 : i32
    %c0_i32_1 = arith.constant 0 : i32
    return %c0_i32, %c0_i32_0 : i32, i32
  }
  func.func @transform_3(%arg0: i32) -> (i32, i32) {
    %c0_i32 = arith.constant 0 : i32
    %c0_i32_0 = arith.constant 0 : i32
    %c0_i32_1 = arith.constant 0 : i32
    return %c0_i32, %c0_i32_0 : i32, i32
  }
  func.func @transform_4(%arg0: i32) -> (i32, i32) {
    %c0_i32 = arith.constant 0 : i32
    %c0_i32_0 = arith.constant 0 : i32
    %c0_i32_1 = arith.constant 0 : i32
    return %c0_i32, %c0_i32_0 : i32, i32
  }
  func.func @transform_5(%arg0: i32) -> (i32, i32) {
    %c0_i32 = arith.constant 0 : i32
    %c0_i32_0 = arith.constant 0 : i32
    return %c0_i32, %arg0 : i32, i32
  }
}

</mosaic_0001>

<llo_original>
// kernel: tpu_custom_call.1
$region0: #{tpu_custom_call.1}
  #allocation0 [shape = 'u32[]', space=smem, size = 0x4, offset = 0x4, fixed_abs, tag = 'smem constant byte address 0x4 - core index']
  #allocation1 [shape = 'u32[144,128]{1,0:T(1,128)}', space=vmem, size = 0x12000, scoped, tag = 'internal scratch']
  %s0 = inlined_call_operand.hbm [shape: f32[16,32], index: 0, kind: input, shape index: {}]
  %s1 = inlined_call_operand.hbm [shape: f32[32,128], index: 1, kind: input, shape index: {}]
  %s2 = inlined_call_operand.vmem [shape: f32[1,128], index: 2, kind: input, shape index: {}]
  %s3 = inlined_call_operand.vmem [shape: f32[2,128], index: 3, kind: input, shape index: {}]
  %s4 = inlined_call_operand.vmem [shape: f32[2,1], index: 4, kind: input, shape index: {}]
  %s5 = inlined_call_operand.hbm [shape: f32[2,16], index: 5, kind: output, shape index: {}]
  %s6 = sld [smem:[#allocation0]]
  $region38: #{tpu_custom_call.1} parent=0
    _
  %s8 = ssub.s32 1, %s6
  %s9 = scalar_select 0, %s8, %s6
  $region1: #{tpu_custom_call.1} parent=0
    #allocation2 [shape = 'u8[8192]{0}', space=vmem, size = 0x2000, scoped, tag = 'input window, operand 0, single buffered']
    #allocation3 [shape = 's32[1]{0}', space=sflag, size = 0x4, scoped, tag = 'scoped memory for tpu_custom_call.1']
    #allocation4 [shape = 's32[1]{0}', space=sflag, size = 0x4, scoped, tag = 'scoped memory for tpu_custom_call.1']
    #allocation5 [shape = 'u8[16384]{0}', space=vmem, size = 0x4000, scoped, tag = 'input window, operand 1, single buffered']
    #allocation6 [shape = 's32[1]{0}', space=sflag, size = 0x4, scoped, tag = 'scoped memory for tpu_custom_call.1']
    #allocation7 [shape = 'u8[1024]{0}', space=vmem, size = 0x400, scoped, tag = 'output window, operand 0, single buffered']
    %10 = vsyncpa [#allocation3], 0
    %11 = vsyncpa [#allocation6], 0
    %12 = vsyncpa [#allocation4], 0
    // Predicated region
    $region2: #{tpu_custom_call.1} parent=1 // pred_check
      _
    $region3: #{tpu_custom_call.1} parent=1 // pred_check_branch
      %14 = sbr.rel (0) target = $region5
    $region4: #{tpu_custom_call.1} parent=1 // pred_region
      %s16 = ssub.s32 256, 256
      %17 = vsyncadd [#allocation3], %s16
      %s18 = sshll.u32 [#allocation2], 4
      %s19 = int_to_ptr.vmem [resolvable:$true] %s18
      %24 = dma.hbm_to_vmem [thread:$0]  %s0, 256, %s19, [#allocation3], 128, 128, 8
    $region5: #{tpu_custom_call.1} parent=1 // pred_fallthru
      _
    // Predicated region
    $region6: #{tpu_custom_call.1} parent=1 // pred_check
      _
    $region7: #{tpu_custom_call.1} parent=1 // pred_check_branch
      %26 = sbr.rel (0) target = $region9
    $region8: #{tpu_custom_call.1} parent=1 // pred_region
      %s28 = ssub.s32 512, 512
      %29 = vsyncadd [#allocation6], %s28
      %s30 = sshll.u32 [#allocation5], 4
      %s31 = int_to_ptr.vmem [resolvable:$true] %s30
      %36 = dma.hbm_to_vmem [thread:$0]  %s1, 512, %s31, [#allocation6], 128, 128, 8
    $region9: #{tpu_custom_call.1} parent=1 // pred_fallthru
      _
    // Predicated region
    $region10: #{tpu_custom_call.1} parent=1 // pred_check
      _
    $region11: #{tpu_custom_call.1} parent=1 // pred_check_branch
      %38 = sbr.rel (0) target = $region13
    $region12: #{tpu_custom_call.1} parent=1 // pred_region
      _
    $region13: #{tpu_custom_call.1} parent=1 // pred_fallthru
      _
    // Predicated region
    $region14: #{tpu_custom_call.1} parent=1 // pred_check
      _
    $region15: #{tpu_custom_call.1} parent=1 // pred_check_branch
      %40 = sbr.rel (0) target = $region17
    $region16: #{tpu_custom_call.1} parent=1 // pred_region
      _
    $region17: #{tpu_custom_call.1} parent=1 // pred_fallthru
      _
    // Predicated region
    $region18: #{tpu_custom_call.1} parent=1 // pred_check
      _
    $region19: #{tpu_custom_call.1} parent=1 // pred_check_branch
      %42 = sbr.rel (0) target = $region21
    $region20: #{tpu_custom_call.1} parent=1 // pred_region
      _
    $region21: #{tpu_custom_call.1} parent=1 // pred_fallthru
      _
    // Predicated region
    $region22: #{tpu_custom_call.1} parent=1 // pred_check
      _
    $region23: #{tpu_custom_call.1} parent=1 // pred_check_branch
      %44 = sbr.rel (0) target = $region25
    $region24: #{tpu_custom_call.1} parent=1 // pred_region
      %45 = dma.done [#allocation3], 256
    $region25: #{tpu_custom_call.1} parent=1 // pred_fallthru
      _
    // Predicated region
    $region26: #{tpu_custom_call.1} parent=1 // pred_check
      _
    $region27: #{tpu_custom_call.1} parent=1 // pred_check_branch
      %47 = sbr.rel (0) target = $region29
    $region28: #{tpu_custom_call.1} parent=1 // pred_region
      %48 = dma.done [#allocation6], 512
    $region29: #{tpu_custom_call.1} parent=1 // pred_fallthru
      _
    %v49 = vld [vmem:[#allocation2] sm:$0xff]
    %v50 = vld [vmem:[#allocation2 + $0x8] sm:$0xff]
    %v51 = vld [vmem:[#allocation5] sm:$0xff]
    %v52 = vld [vmem:[#allocation5 + $0x8] sm:$0xff]
    %v53 = vld [vmem:[#allocation5 + $0x10] sm:$0xff]
    %v54 = vld [vmem:[#allocation5 + $0x18] sm:$0xff]
    %v55 = vld [vmem:[%s2] sm:$0x1]
    %v57 = vlaneseq
    %v58 = vshrl.u32 %v57, 7
    %v59 = vsub.s32 0, %v58
    %v60 = vrot.slane %v55, %v59
    %vm62 = vcmask 261120
    %v64 = vsel %vm62, %v49, 0
    %v67 = vsel %vm62, %v50, 0
    %69 = vmatprep.subr.mxu0 0.0
    %70 = vmatpush1.msra.mxu0 0.0
    %71 = vmatprep.subr.mxu0 0.0
    %72 = vmatpush1.msra.mxu0 0.0
    %73 = vmatprep.subr.mxu0 0.0
    %74 = vmatpush1.msra.mxu0 0.0
    %75 = vmatprep.subr.mxu0 0.0
    %76 = vmatpush1.msra.mxu0 0.0
    %77 = vmatprep.subr.mxu0 0.0
    %78 = vmatpush1.msra.mxu0 0.0
    %79 = vmatprep.subr.mxu0 0.0
    %80 = vmatpush1.msra.mxu0 0.0
    %81 = vmatprep.subr.mxu0 0.0
    %82 = vmatpush1.msra.mxu0 0.0
    %83 = vmatprep.subr.mxu0 0.0
    %84 = vmatpush1.msra.mxu0 0.0
    %85 = vmatprep.subr.mxu0 0.0
    %86 = vmatpush1.msra.mxu0 0.0
    %87 = vmatprep.subr.mxu0 0.0
    %88 = vmatpush1.msra.mxu0 0.0
    %89 = vmatprep.subr.mxu0 0.0
    %90 = vmatpush1.msra.mxu0 0.0
    %91 = vmatprep.subr.mxu0 0.0
    %92 = vmatpush1.msra.mxu0 0.0
    %93 = vmatprep.subr.mxu0 0.0
    %94 = vmatpush1.msra.mxu0 %v54
    %95 = vmatprep.subr.mxu0 0.0
    %96 = vmatpush1.msra.mxu0 %v53
    %97 = vmatprep.subr.mxu0 0.0
    %98 = vmatpush1.msra.mxu0 %v52
    %99 = vmatprep.subr.mxu0 0.0
    %100 = vmatpush1.msra.mxu0 %v51
    %101 = vmatprep.subr.mxu0 0.0
    %102 = vmatpush2.msra.mxu0 0.0
    %103 = vmatprep.subr.mxu0 0.0
    %104 = vmatpush2.msra.mxu0 0.0
    %105 = vmatprep.subr.mxu0 0.0
    %106 = vmatpush2.msra.mxu0 0.0
    %107 = vmatprep.subr.mxu0 0.0
    %108 = vmatpush2.msra.mxu0 0.0
    %109 = vmatprep.subr.mxu0 0.0
    %110 = vmatpush2.msra.mxu0 0.0
    %111 = vmatprep.subr.mxu0 0.0
    %112 = vmatpush2.msra.mxu0 0.0
    %113 = vmatprep.subr.mxu0 0.0
    %114 = vmatpush2.msra.mxu0 0.0
    %115 = vmatprep.subr.mxu0 0.0
    %116 = vmatpush2.msra.mxu0 0.0
    %117 = vmatprep.subr.mxu0 0.0
    %118 = vmatpush2.msra.mxu0 0.0
    %119 = vmatprep.subr.mxu0 0.0
    %120 = vmatpush2.msra.mxu0 0.0
    %121 = vmatprep.subr.mxu0 0.0
    %122 = vmatpush2.msra.mxu0 0.0
    %123 = vmatprep.subr.mxu0 0.0
    %124 = vmatpush2.msra.mxu0 0.0
    %125 = vmatprep.subr.mxu0 0.0
    %126 = vmatpush2.msra.mxu0 0.0
    %127 = vmatprep.subr.mxu0 0.0
    %128 = vmatpush2.msra.mxu0 0.0
    %129 = vmatprep.subr.mxu0 0.0
    %130 = vmatpush2.msra.mxu0 0.0
    %131 = vmatprep.subr.mxu0 0.0
    %132 = vmatpush2.msra.mxu0 0.0
    %133 = vmatprep.mubr.f32.mxu0 0.0
    %134 = vmatmul.mubr.f32.gmra.mxu0 %v64
    %v135 = vpop.f32.mrf.mxu0
    %v136 = vadd.f32 %v60, %v135
    %v137 = vpop.f32.mrf.mxu0
    %138 = vmatprep.mubr.f32.mxu0 0.0
    %139 = vmatmul.mubr.f32.gmra.mxu0 %v67
    %v140 = vpop.f32.mrf.mxu0
    %v141 = vadd.f32 %v60, %v140
    %v142 = vpop.f32.mrf.mxu0
    %143 = vdwg.mxu0
    %v144 = vmax.f32 %v136, 0.0
    %v145 = vmax.f32 %v141, 0.0
    %v146 = vld [vmem:[%s3] sm:$0x3]
    %v147 = vld [vmem:[%s4] sm:$0x3]
    %149 = vset.pattern.permute.xlu0 0
    %150 = vperm.xlu0 %149, %v147
    %v151 = vpop.permute.xlu0 %150
    %153 = vmatprep.subr.mxu0 0.0
    %154 = vmatpush1.xpose.msra.mxu0 0.0
    %155 = vmatprep.subr.mxu0 0.0
    %156 = vmatpush1.xpose.msra.mxu0 0.0
    %157 = vmatprep.subr.mxu0 0.0
    %158 = vmatpush1.xpose.msra.mxu0 0.0
    %159 = vmatprep.subr.mxu0 0.0
    %160 = vmatpush1.xpose.msra.mxu0 0.0
    %161 = vmatprep.subr.mxu0 0.0
    %162 = vmatpush1.xpose.msra.mxu0 0.0
    %163 = vmatprep.subr.mxu0 0.0
    %164 = vmatpush1.xpose.msra.mxu0 0.0
    %165 = vmatprep.subr.mxu0 0.0
    %166 = vmatpush1.xpose.msra.mxu0 0.0
    %167 = vmatprep.subr.mxu0 0.0
    %168 = vmatpush1.xpose.msra.mxu0 0.0
    %169 = vmatprep.subr.mxu0 0.0
    %170 = vmatpush1.xpose.msra.mxu0 0.0
    %171 = vmatprep.subr.mxu0 0.0
    %172 = vmatpush1.xpose.msra.mxu0 0.0
    %173 = vmatprep.subr.mxu0 0.0
    %174 = vmatpush1.xpose.msra.mxu0 0.0
    %175 = vmatprep.subr.mxu0 0.0
    %176 = vmatpush1.xpose.msra.mxu0 0.0
    %177 = vmatprep.subr.mxu0 0.0
    %178 = vmatpush1.xpose.msra.mxu0 0.0
    %179 = vmatprep.subr.mxu0 0.0
    %180 = vmatpush1.xpose.msra.mxu0 0.0
    %181 = vmatprep.subr.mxu0 0.0
    %182 = vmatpush1.xpose.msra.mxu0 %v145
    %183 = vmatprep.subr.mxu0 0.0
    %184 = vmatpush1.xpose.msra.mxu0 %v144
    %185 = vmatprep.subr.mxu0 0.0
    %186 = vmatpush2.xpose.msra.mxu0 0.0
    %187 = vmatprep.subr.mxu0 0.0
    %188 = vmatpush2.xpose.msra.mxu0 0.0
    %189 = vmatprep.subr.mxu0 0.0
    %190 = vmatpush2.xpose.msra.mxu0 0.0
    %191 = vmatprep.subr.mxu0 0.0
    %192 = vmatpush2.xpose.msra.mxu0 0.0
    %193 = vmatprep.subr.mxu0 0.0
    %194 = vmatpush2.xpose.msra.mxu0 0.0
    %195 = vmatprep.subr.mxu0 0.0
    %196 = vmatpush2.xpose.msra.mxu0 0.0
    %197 = vmatprep.subr.mxu0 0.0
    %198 = vmatpush2.xpose.msra.mxu0 0.0
    %199 = vmatprep.subr.mxu0 0.0
    %200 = vmatpush2.xpose.msra.mxu0 0.0
    %201 = vmatprep.subr.mxu0 0.0
    %202 = vmatpush2.xpose.msra.mxu0 0.0
    %203 = vmatprep.subr.mxu0 0.0
    %204 = vmatpush2.xpose.msra.mxu0 0.0
    %205 = vmatprep.subr.mxu0 0.0
    %206 = vmatpush2.xpose.msra.mxu0 0.0
    %207 = vmatprep.subr.mxu0 0.0
    %208 = vmatpush2.xpose.msra.mxu0 0.0
    %209 = vmatprep.subr.mxu0 0.0
    %210 = vmatpush2.xpose.msra.mxu0 0.0
    %211 = vmatprep.subr.mxu0 0.0
    %212 = vmatpush2.xpose.msra.mxu0 0.0
    %213 = vmatprep.subr.mxu0 0.0
    %214 = vmatpush2.xpose.msra.mxu0 0.0
    %215 = vmatprep.subr.mxu0 0.0
    %216 = vmatpush2.xpose.msra.mxu0 0.0
    %217 = vmatprep.mubr.f32.mxu0 0.0
    %218 = vmatmul.mubr.f32.gmra.mxu0 %v146
    %v219 = vpop.f32.mrf.mxu0
    %v220 = vadd.f32 %v151, %v219
    %v221 = vpop.f32.mrf.mxu0
    %222 = vdwg.mxu0
    %vm223 = vcmask 123904
    %224 = vst.msk [vmem:[#allocation7] sm:$0x3] %vm223, %v220
    // Predicated region
    $region30: #{tpu_custom_call.1} parent=1 // pred_check
      _
    $region31: #{tpu_custom_call.1} parent=1 // pred_check_branch
      %226 = sbr.rel (0) target = $region33
    $region32: #{tpu_custom_call.1} parent=1 // pred_region
      %s228 = ssub.s32 32, 32
      %229 = vsyncadd [#allocation4], %s228
      %s231 = sshll.u32 [#allocation7], 4
      %s232 = int_to_ptr.vmem [resolvable:$true] %s231
      %234 = dma.vmem_to_hbm [thread:$0]  %s232, 32, %s5, [#allocation4]
    $region33: #{tpu_custom_call.1} parent=1 // pred_fallthru
      _
    // Predicated region
    $region34: #{tpu_custom_call.1} parent=1 // pred_check
      _
    $region35: #{tpu_custom_call.1} parent=1 // pred_check_branch
      %236 = sbr.rel (0) target = $region37
    $region36: #{tpu_custom_call.1} parent=1 // pred_region
      %237 = dma.done [#allocation4], 32
    $region37: #{tpu_custom_call.1} parent=1 // pred_fallthru
      _
    %238 = vsyncpa [#allocation3], 1
    %239 = vsyncpa [#allocation6], 1
    %240 = vsyncpa [#allocation4], 1

</llo_original>
